<compile_context>
chip_gen: v7x
topology: tpu7x:2x2x1
jax: 0.10.0
libtpu: 0.0.40
codegen_flags: <defaults>
</compile_context>

<pallas_src>
import functools

import jax
import jax.numpy as jnp
from jax.experimental import pallas as pl
from jax.experimental.pallas import tpu as pltpu

_LANE = 128
_SUBLANE = 8
_BN_EPS = 1e-5                      # torch.nn.BatchNorm1d default eps
_SINGLE_BUFFER_MIN_BYTES = 2 << 20  # single-buffer weights only once they are big


def _round_up(n, m):
    return ((n + m - 1) // m) * m


def _pick_batch_tile(B, *, max_tile=256):
    """Batch tile heuristic (see header notes).

    Multiple of 16 (bf16 sublane packing), capped at `max_tile` (generation-
    aware: keeps per-tile f32 intermediates comfortable for v7x's 64 MiB/TC
    VMEM and matches the 2x256 MXU rows on v6e/v7x), sized ~ B/ceil(B/max_tile)
    so round_up(B, TB) never pads close to a full tile, and yielding >=2 grid
    steps whenever B allows so v7x's second TensorCore gets a share.
    """
    if B <= 16:
        return _round_up(max(B, 1), _SUBLANE)
    n_tiles = max(pl.cdiv(_round_up(B, 16), max_tile), 2)
    return min(_round_up(pl.cdiv(B, n_tiles), 16), max_tile)


# ---------------------------------------------------------------------------
# Fused kernel: (Linear(+folded BN) -> ReLU -> Dropout(eval)) x L
# ---------------------------------------------------------------------------

def _fused_mlp_kernel(n_layers, compute_dtype, x_ref, *refs):
    out_ref = refs[-1]
    h = x_ref[...].astype(jnp.float32)                    # (TB, F0p) f32
    for li in range(n_layers):
        w_ref, b_ref = refs[2 * li], refs[2 * li + 1]
        # MXU matmul in compute_dtype (bf16 by default) with f32 accumulation.
        y = jnp.dot(h.astype(compute_dtype), w_ref[...],
                    preferred_element_type=jnp.float32)
        y = y + b_ref[...]                                # (1, Np) f32 bias broadcast
        # ReLU; Dropout(p=0.05) is identity at inference.
        h = jnp.maximum(y, 0.0)
    out_ref[...] = h.astype(out_ref.dtype)


# ---------------------------------------------------------------------------
# Wrapper: padding, BlockSpecs, batch grid, VMEM budget
# ---------------------------------------------------------------------------

def mlp_forward(x, layers, *, compute_dtype=jnp.bfloat16, max_batch_tile=256):
    """Pallas-backed equivalent of MLP.forward (inference).

    layers: list of BN-folded (W', b') per Linear, with W' stored as
            (in_features, out_features) so the kernel computes h @ W' + b'.
    """
    B, F0 = x.shape
    n_layers = len(layers)
    dims = [F0] + [w.shape[1] for (w, _b) in layers]
    pdims = [_round_up(d, _LANE) for d in dims]           # lane-dense feature axes

    TB = _pick_batch_tile(B, max_tile=max_batch_tile)
    Bp = _round_up(B, TB)
    n_tiles = Bp // TB

    w_itemsize = jnp.dtype(compute_dtype).itemsize
    w_block_bytes = sum(pdims[i] * pdims[i + 1] for i in range(n_layers)) * w_itemsize
    b_block_bytes = sum(pdims[1:]) * 4
    param_bytes = w_block_bytes + b_block_bytes
    single_buffer = param_bytes > _SINGLE_BUFFER_MIN_BYTES
    # Grid-invariant operands: index_map always (0,0).  Single-buffer them once
    # their resident footprint matters (default pipelining double-buffers every
    # input, doubling VMEM for weights that never change).
    param_spec_kwargs = (
        {"pipeline_mode": pl.Buffered(buffer_count=1)} if single_buffer else {}
    )

    # --- pad inputs / params; padded columns stay exactly zero in the kernel ---
    xp = jnp.pad(x, ((0, Bp - B), (0, pdims[0] - F0)))

    flat_inputs = [xp]
    in_specs = [pl.BlockSpec((TB, pdims[0]), lambda i: (i, 0))]
    for li, (w, b) in enumerate(layers):
        kp, np_ = pdims[li], pdims[li + 1]
        wp = jnp.pad(w, ((0, kp - w.shape[0]), (0, np_ - w.shape[1])))
        wp = wp.astype(compute_dtype)                     # bf16 weights: half the DMA/VMEM
        bp = jnp.pad(b.reshape(1, -1), ((0, 0), (0, np_ - b.shape[0])))
        bp = bp.astype(jnp.float32)                       # epilogue stays f32
        flat_inputs += [wp, bp]
        in_specs += [
            pl.BlockSpec((kp, np_), lambda i: (0, 0), **param_spec_kwargs),
            pl.BlockSpec((1, np_), lambda i: (0, 0), **param_spec_kwargs),
        ]

    out_spec = pl.BlockSpec((TB, pdims[-1]), lambda i: (i, 0))

    # --- VMEM budget (v5e default scoped limit is only 16 MiB) ---------------
    resident = (param_bytes * (1 if single_buffer else 2)       # weight/bias buffers
                + 2 * TB * pdims[0] * 4                         # double-buffered input tile
                + 2 * TB * pdims[-1] * 4                        # double-buffered output tile
                + 2 * TB * max(pdims) * 4)                      # live f32 intermediates
    vmem_limit = int(min(max(2 * resident, 32 << 20), 64 << 20))

    cost = pl.CostEstimate(
        flops=2 * Bp * sum(pdims[i] * pdims[i + 1] for i in range(n_layers)),
        transcendentals=0,
        bytes_accessed=int(Bp * pdims[0] * 4 + param_bytes + Bp * pdims[-1] * 4),
    )

    kernel = functools.partial(_fused_mlp_kernel, n_layers, compute_dtype)
    out = pl.pallas_call(
        kernel,
        out_shape=jax.ShapeDtypeStruct((Bp, pdims[-1]), x.dtype),
        grid=(n_tiles,),
        in_specs=in_specs,
        out_specs=out_spec,
        compiler_params=pltpu.CompilerParams(
            dimension_semantics=("parallel",),            # v7x: 2 TCs share batch tiles
            vmem_limit_bytes=vmem_limit,
        ),
        cost_estimate=cost,
    )(*flat_inputs)
    return out[:B, :dims[-1]]


# ---------------------------------------------------------------------------
# BatchNorm fold (done ONCE at parameter-build time, outside the jitted call)
# ---------------------------------------------------------------------------

def fold_batchnorm(raw_layers, eps=_BN_EPS):
    """(W, b, gamma, beta, mean, var) -> (W', b') with eval-mode BN folded in."""
    folded = []
    for (w, b, gamma, beta, mu, var) in raw_layers:
        scale = gamma * jax.lax.rsqrt(var + eps)          # (out,)
        folded.append((w * scale[None, :], (b - mu) * scale + beta))
    return folded


# ---------------------------------------------------------------------------
# Pure-JAX reference (PyTorch eval-mode semantics, un-folded params, f32)
# ---------------------------------------------------------------------------

def ref_forward(x, raw_layers, eps=_BN_EPS):
    h = x
    for (w, b, g, beta, mu, var) in raw_layers:
        y = h @ w + b
        y = (y - mu) / jnp.sqrt(var + eps) * g + beta
        h = jnp.maximum(y, 0.0)                           # Dropout identity at eval
    return h


# ---------------------------------------------------------------------------
# Deterministic parameter construction
# (xavier_uniform_ weights per reset_parameters; random bias / BN stats to
#  exercise the full eval-mode BatchNorm path)
# ---------------------------------------------------------------------------

def make_params(key, num_features):
    layers = []
    for i in range(len(num_features) - 1):
        fin, fout = num_features[i], num_features[i + 1]
        key, kw, kb, kg, kbe, km, kv = jax.random.split(key, 7)
        limit = (6.0 / (fin + fout)) ** 0.5               # xavier_uniform_
        # stored (in, out) so the kernel does x @ W; same distribution as (out, in).
        w = jax.random.uniform(kw, (fin, fout), jnp.float32, -limit, limit)
        bbound = 1.0 / (fin ** 0.5)                       # PyTorch Linear bias default
        b = jax.random.uniform(kb, (fout,), jnp.float32, -bbound, bbound)
        gamma = jax.random.uniform(kg, (fout,), jnp.float32, 0.5, 1.5)
        beta = 0.1 * jax.random.normal(kbe, (fout,), jnp.float32)
        mean = 0.1 * jax.random.normal(km, (fout,), jnp.float32)
        var = jax.random.uniform(kv, (fout,), jnp.float32, 0.5, 1.5)
        layers.append((w, b, gamma, beta, mean, var))
    return layers


# ---------------------------------------------------------------------------
# Main
# ---------------------------------------------------------------------------

if __name__ == "__main__":
    num_features = [16, 32, 64, 8]    # MLP(num_features): 3 Linear+BN+ReLU+Dropout blocks
    batch = 8

    key = jax.random.PRNGKey(0)
    kx, kp = jax.random.split(key)
    x = jax.random.normal(kx, (batch, num_features[0]), jnp.float32)
    raw_layers = make_params(kp, num_features)

    # Fold BatchNorm1d (eval mode) into each Linear once, up front.
    layers = fold_batchnorm(raw_layers)

    ref = ref_forward(x, raw_layers)

    fwd = jax.jit(mlp_forward, static_argnames=("compute_dtype", "max_batch_tile"))

    # 1) f32 compute path: exact check of structure / padding / BN fold.
    out_f32 = jax.block_until_ready(fwd(x, layers, compute_dtype=jnp.float32))
    assert out_f32.shape == (batch, num_features[-1])
    err_f32 = float(jnp.max(jnp.abs(out_f32 - ref)))
    assert jnp.allclose(out_f32, ref, atol=1e-5, rtol=1e-5), err_f32

    # 2) Default bf16-weight MXU path (the production configuration): loose tol.
    out_bf16 = jax.block_until_ready(fwd(x, layers))
    assert out_bf16.shape == (batch, num_features[-1])
    err_bf16 = float(jnp.max(jnp.abs(out_bf16 - ref)))
    assert jnp.allclose(out_bf16, ref, atol=5e-2, rtol=5e-2), err_bf16

    print("KERNEL_OK")
</pallas_src>

<mosaic_0001>
module attributes {stable_mosaic.version = 11 : i64} {
  func.func @_fused_mlp_kernel(%arg0: i32, %arg1: memref<8x128xf32, #tpu.memory_space<vmem>>, %arg2: memref<128x128xf32, #tpu.memory_space<vmem>>, %arg3: memref<1x128xf32, #tpu.memory_space<vmem>>, %arg4: memref<128x128xf32, #tpu.memory_space<vmem>>, %arg5: memref<1x128xf32, #tpu.memory_space<vmem>>, %arg6: memref<128x128xf32, #tpu.memory_space<vmem>>, %arg7: memref<1x128xf32, #tpu.memory_space<vmem>>, %arg8: memref<8x128xf32, #tpu.memory_space<vmem>>) attributes {dimension_semantics = [#tpu.dimension_semantics<parallel>], iteration_bounds = array<i64: 1>, scalar_prefetch = 0 : i64, scratch_operands = 0 : i64, tpu.core_type = #tpu.core_type<tc>, window_params = [{transform_indices = @transform_0, window_bounds = array<i64: 8, 128>}, {pipeline_mode = #tpu.pipeline_mode<synchronous>, transform_indices = @transform_1, window_bounds = array<i64: 128, 128>}, {pipeline_mode = #tpu.pipeline_mode<synchronous>, transform_indices = @transform_2, window_bounds = array<i64: 1, 128>}, {pipeline_mode = #tpu.pipeline_mode<synchronous>, transform_indices = @transform_3, window_bounds = array<i64: 128, 128>}, {pipeline_mode = #tpu.pipeline_mode<synchronous>, transform_indices = @transform_4, window_bounds = array<i64: 1, 128>}, {pipeline_mode = #tpu.pipeline_mode<synchronous>, transform_indices = @transform_5, window_bounds = array<i64: 128, 128>}, {pipeline_mode = #tpu.pipeline_mode<synchronous>, transform_indices = @transform_6, window_bounds = array<i64: 1, 128>}, {transform_indices = @transform_7, window_bounds = array<i64: 8, 128>}]} {
    %c0 = arith.constant 0 : index
    %c0_0 = arith.constant 0 : index
    %0 = vector.load %arg1[%c0, %c0_0] : memref<8x128xf32, #tpu.memory_space<vmem>>, vector<8x128xf32>
    %c0_1 = arith.constant 0 : index
    %c0_2 = arith.constant 0 : index
    %1 = vector.load %arg2[%c0_1, %c0_2] : memref<128x128xf32, #tpu.memory_space<vmem>>, vector<128x128xf32>
    %cst = arith.constant dense<0.000000e+00> : vector<8x128xf32>
    %2 = tpu.matmul %0, %1, %cst {dimension_numbers = #tpu.dot_dimension_numbers<[1], [0], [0], [1], [0, 0, 1, 1], [], []>} : vector<8x128xf32>, vector<128x128xf32>, vector<8x128xf32> -> vector<8x128xf32>
    %c0_3 = arith.constant 0 : index
    %c0_4 = arith.constant 0 : index
    %3 = vector.load %arg3[%c0_3, %c0_4] : memref<1x128xf32, #tpu.memory_space<vmem>>, vector<1x128xf32>
    %4 = vector.broadcast %3 : vector<1x128xf32> to vector<8x128xf32>
    %5 = arith.addf %2, %4 : vector<8x128xf32>
    %cst_5 = arith.constant 0.000000e+00 : f32
    %6 = vector.broadcast %cst_5 : f32 to vector<8x128xf32>
    %7 = arith.maximumf %5, %6 : vector<8x128xf32>
    %c0_6 = arith.constant 0 : index
    %c0_7 = arith.constant 0 : index
    %8 = vector.load %arg4[%c0_6, %c0_7] : memref<128x128xf32, #tpu.memory_space<vmem>>, vector<128x128xf32>
    %cst_8 = arith.constant dense<0.000000e+00> : vector<8x128xf32>
    %9 = tpu.matmul %7, %8, %cst_8 {dimension_numbers = #tpu.dot_dimension_numbers<[1], [0], [0], [1], [0, 0, 1, 1], [], []>} : vector<8x128xf32>, vector<128x128xf32>, vector<8x128xf32> -> vector<8x128xf32>
    %c0_9 = arith.constant 0 : index
    %c0_10 = arith.constant 0 : index
    %10 = vector.load %arg5[%c0_9, %c0_10] : memref<1x128xf32, #tpu.memory_space<vmem>>, vector<1x128xf32>
    %11 = vector.broadcast %10 : vector<1x128xf32> to vector<8x128xf32>
    %12 = arith.addf %9, %11 : vector<8x128xf32>
    %cst_11 = arith.constant 0.000000e+00 : f32
    %13 = vector.broadcast %cst_11 : f32 to vector<8x128xf32>
    %14 = arith.maximumf %12, %13 : vector<8x128xf32>
    %c0_12 = arith.constant 0 : index
    %c0_13 = arith.constant 0 : index
    %15 = vector.load %arg6[%c0_12, %c0_13] : memref<128x128xf32, #tpu.memory_space<vmem>>, vector<128x128xf32>
    %cst_14 = arith.constant dense<0.000000e+00> : vector<8x128xf32>
    %16 = tpu.matmul %14, %15, %cst_14 {dimension_numbers = #tpu.dot_dimension_numbers<[1], [0], [0], [1], [0, 0, 1, 1], [], []>} : vector<8x128xf32>, vector<128x128xf32>, vector<8x128xf32> -> vector<8x128xf32>
    %c0_15 = arith.constant 0 : index
    %c0_16 = arith.constant 0 : index
    %17 = vector.load %arg7[%c0_15, %c0_16] : memref<1x128xf32, #tpu.memory_space<vmem>>, vector<1x128xf32>
    %18 = vector.broadcast %17 : vector<1x128xf32> to vector<8x128xf32>
    %19 = arith.addf %16, %18 : vector<8x128xf32>
    %cst_17 = arith.constant 0.000000e+00 : f32
    %20 = vector.broadcast %cst_17 : f32 to vector<8x128xf32>
    %21 = arith.maximumf %19, %20 : vector<8x128xf32>
    %c0_18 = arith.constant 0 : index
    %c0_19 = arith.constant 0 : index
    %22 = vector.load %arg8[%c0_18, %c0_19] : memref<8x128xf32, #tpu.memory_space<vmem>>, vector<8x128xf32>
    tpu.vector_store %arg8[%c0_18, %c0_19], %21 {strides = array<i32>} : memref<8x128xf32, #tpu.memory_space<vmem>>, vector<8x128xf32>,
    return
  }
  func.func @transform_0(%arg0: i32) -> (i32, i32) {
    %c0_i32 = arith.constant 0 : i32
    %c0_i32_0 = arith.constant 0 : i32
    return %arg0, %c0_i32 : i32, i32
  }
  func.func @transform_1(%arg0: i32) -> (i32, i32) {
    %c0_i32 = arith.constant 0 : i32
    %c0_i32_0 = arith.constant 0 : i32
    %c0_i32_1 = arith.constant 0 : i32
    return %c0_i32, %c0_i32_0 : i32, i32
  }
  func.func @transform_2(%arg0: i32) -> (i32, i32) {
    %c0_i32 = arith.constant 0 : i32
    %c0_i32_0 = arith.constant 0 : i32
    %c0_i32_1 = arith.constant 0 : i32
    return %c0_i32, %c0_i32_0 : i32, i32
  }
  func.func @transform_3(%arg0: i32) -> (i32, i32) {
    %c0_i32 = arith.constant 0 : i32
    %c0_i32_0 = arith.constant 0 : i32
    %c0_i32_1 = arith.constant 0 : i32
    return %c0_i32, %c0_i32_0 : i32, i32
  }
  func.func @transform_4(%arg0: i32) -> (i32, i32) {
    %c0_i32 = arith.constant 0 : i32
    %c0_i32_0 = arith.constant 0 : i32
    %c0_i32_1 = arith.constant 0 : i32
    return %c0_i32, %c0_i32_0 : i32, i32
  }
  func.func @transform_5(%arg0: i32) -> (i32, i32) {
    %c0_i32 = arith.constant 0 : i32
    %c0_i32_0 = arith.constant 0 : i32
    %c0_i32_1 = arith.constant 0 : i32
    return %c0_i32, %c0_i32_0 : i32, i32
  }
  func.func @transform_6(%arg0: i32) -> (i32, i32) {
    %c0_i32 = arith.constant 0 : i32
    %c0_i32_0 = arith.constant 0 : i32
    %c0_i32_1 = arith.constant 0 : i32
    return %c0_i32, %c0_i32_0 : i32, i32
  }
  func.func @transform_7(%arg0: i32) -> (i32, i32) {
    %c0_i32 = arith.constant 0 : i32
    %c0_i32_0 = arith.constant 0 : i32
    return %arg0, %c0_i32 : i32, i32
  }
}

</mosaic_0001>

<llo_original>
// kernel: mlp_forward.1
$region0: #{mlp_forward.1}
  #allocation0 [shape = 'u32[]', space=smem, size = 0x4, offset = 0x4, fixed_abs, tag = 'smem constant byte address 0x4 - core index']
  #allocation1 [shape = 'u32[144,128]{1,0:T(1,128)}', space=vmem, size = 0x12000, scoped, tag = 'internal scratch']
  %s0 = inlined_call_operand.vmem [shape: f32[8,128], index: 0, kind: input, shape index: {}]
  %s1 = inlined_call_operand.vmem [shape: f32[128,128], index: 1, kind: input, shape index: {}]
  %s2 = inlined_call_operand.vmem [shape: f32[1,128], index: 2, kind: input, shape index: {}]
  %s3 = inlined_call_operand.vmem [shape: f32[128,128], index: 3, kind: input, shape index: {}]
  %s4 = inlined_call_operand.vmem [shape: f32[1,128], index: 4, kind: input, shape index: {}]
  %s5 = inlined_call_operand.vmem [shape: f32[128,128], index: 5, kind: input, shape index: {}]
  %s6 = inlined_call_operand.vmem [shape: f32[1,128], index: 6, kind: input, shape index: {}]
  %s7 = inlined_call_operand.hbm [shape: f32[8,128], index: 7, kind: output, shape index: {}]
  %s8 = sld [smem:[#allocation0]]
  $region38: #{mlp_forward.1} parent=0
    _
  %s10 = ssub.s32 1, %s8
  %s11 = scalar_select 0, %s10, %s8
  $region1: #{mlp_forward.1} parent=0
    #allocation2 [shape = 'u8[4096]{0}', space=vmem, size = 0x1000, scoped, tag = 'output window, operand 0, single buffered']
    #allocation3 [shape = 's32[1]{0}', space=sflag, size = 0x4, scoped, tag = 'scoped memory for mlp_forward.1']
    %12 = vsyncpa [#allocation3], 0
    // Predicated region
    $region2: #{mlp_forward.1} parent=1 // pred_check
      _
    $region3: #{mlp_forward.1} parent=1 // pred_check_branch
      %14 = sbr.rel (0) target = $region5
    $region4: #{mlp_forward.1} parent=1 // pred_region
      _
    $region5: #{mlp_forward.1} parent=1 // pred_fallthru
      _
    // Predicated region
    $region6: #{mlp_forward.1} parent=1 // pred_check
      _
    $region7: #{mlp_forward.1} parent=1 // pred_check_branch
      %16 = sbr.rel (0) target = $region9
    $region8: #{mlp_forward.1} parent=1 // pred_region
      _
    $region9: #{mlp_forward.1} parent=1 // pred_fallthru
      _
    // Predicated region
    $region10: #{mlp_forward.1} parent=1 // pred_check
      _
    $region11: #{mlp_forward.1} parent=1 // pred_check_branch
      %18 = sbr.rel (0) target = $region13
    $region12: #{mlp_forward.1} parent=1 // pred_region
      _
    $region13: #{mlp_forward.1} parent=1 // pred_fallthru
      _
    // Predicated region
    $region14: #{mlp_forward.1} parent=1 // pred_check
      _
    $region15: #{mlp_forward.1} parent=1 // pred_check_branch
      %20 = sbr.rel (0) target = $region17
    $region16: #{mlp_forward.1} parent=1 // pred_region
      _
    $region17: #{mlp_forward.1} parent=1 // pred_fallthru
      _
    // Predicated region
    $region18: #{mlp_forward.1} parent=1 // pred_check
      _
    $region19: #{mlp_forward.1} parent=1 // pred_check_branch
      %22 = sbr.rel (0) target = $region21
    $region20: #{mlp_forward.1} parent=1 // pred_region
      _
    $region21: #{mlp_forward.1} parent=1 // pred_fallthru
      _
    // Predicated region
    $region22: #{mlp_forward.1} parent=1 // pred_check
      _
    $region23: #{mlp_forward.1} parent=1 // pred_check_branch
      %24 = sbr.rel (0) target = $region25
    $region24: #{mlp_forward.1} parent=1 // pred_region
      _
    $region25: #{mlp_forward.1} parent=1 // pred_fallthru
      _
    // Predicated region
    $region26: #{mlp_forward.1} parent=1 // pred_check
      _
    $region27: #{mlp_forward.1} parent=1 // pred_check_branch
      %26 = sbr.rel (0) target = $region29
    $region28: #{mlp_forward.1} parent=1 // pred_region
      _
    $region29: #{mlp_forward.1} parent=1 // pred_fallthru
      _
    %v27 = vld [vmem:[%s0] sm:$0xff]
    %v28 = vld [vmem:[%s1] sm:$0xff]
    %v29 = vld [vmem:[%s1 + $0x8] sm:$0xff]
    %v30 = vld [vmem:[%s1 + $0x10] sm:$0xff]
    %v31 = vld [vmem:[%s1 + $0x18] sm:$0xff]
    %v32 = vld [vmem:[%s1 + $0x20] sm:$0xff]
    %v33 = vld [vmem:[%s1 + $0x28] sm:$0xff]
    %v34 = vld [vmem:[%s1 + $0x30] sm:$0xff]
    %v35 = vld [vmem:[%s1 + $0x38] sm:$0xff]
    %v36 = vld [vmem:[%s1 + $0x40] sm:$0xff]
    %v37 = vld [vmem:[%s1 + $0x48] sm:$0xff]
    %v38 = vld [vmem:[%s1 + $0x50] sm:$0xff]
    %v39 = vld [vmem:[%s1 + $0x58] sm:$0xff]
    %v40 = vld [vmem:[%s1 + $0x60] sm:$0xff]
    %v41 = vld [vmem:[%s1 + $0x68] sm:$0xff]
    %v42 = vld [vmem:[%s1 + $0x70] sm:$0xff]
    %v43 = vld [vmem:[%s1 + $0x78] sm:$0xff]
    %v44 = vld [vmem:[%s2] sm:$0x1]
    %v46 = vlaneseq
    %v47 = vshrl.u32 %v46, 7
    %v48 = vsub.s32 0, %v47
    %v49 = vrot.slane %v44, %v48
    %51 = vmatprep.subr.mxu0 0.0
    %52 = vmatpush1.msra.mxu0 %v28
    %53 = vmatprep.subr.mxu0 0.0
    %54 = vmatpush1.msra.mxu0 %v29
    %55 = vmatprep.subr.mxu0 0.0
    %56 = vmatpush1.msra.mxu0 %v30
    %57 = vmatprep.subr.mxu0 0.0
    %58 = vmatpush1.msra.mxu0 %v31
    %59 = vmatprep.subr.mxu0 0.0
    %60 = vmatpush1.msra.mxu0 %v32
    %61 = vmatprep.subr.mxu0 0.0
    %62 = vmatpush1.msra.mxu0 %v33
    %63 = vmatprep.subr.mxu0 0.0
    %64 = vmatpush1.msra.mxu0 %v34
    %65 = vmatprep.subr.mxu0 0.0
    %66 = vmatpush1.msra.mxu0 %v35
    %67 = vmatprep.subr.mxu0 0.0
    %68 = vmatpush1.msra.mxu0 %v36
    %69 = vmatprep.subr.mxu0 0.0
    %70 = vmatpush1.msra.mxu0 %v37
    %71 = vmatprep.subr.mxu0 0.0
    %72 = vmatpush1.msra.mxu0 %v38
    %73 = vmatprep.subr.mxu0 0.0
    %74 = vmatpush1.msra.mxu0 %v39
    %75 = vmatprep.subr.mxu0 0.0
    %76 = vmatpush1.msra.mxu0 %v40
    %77 = vmatprep.subr.mxu0 0.0
    %78 = vmatpush1.msra.mxu0 %v41
    %79 = vmatprep.subr.mxu0 0.0
    %80 = vmatpush1.msra.mxu0 %v42
    %81 = vmatprep.subr.mxu0 0.0
    %82 = vmatpush1.msra.mxu0 %v43
    %83 = vmatprep.subr.mxu0 0.0
    %84 = vmatpush1.msra.mxu0 0.0
    %85 = vmatprep.subr.mxu0 0.0
    %86 = vmatpush1.msra.mxu0 0.0
    %87 = vmatprep.subr.mxu0 0.0
    %88 = vmatpush1.msra.mxu0 0.0
    %89 = vmatprep.subr.mxu0 0.0
    %90 = vmatpush1.msra.mxu0 0.0
    %91 = vmatprep.subr.mxu0 0.0
    %92 = vmatpush1.msra.mxu0 0.0
    %93 = vmatprep.subr.mxu0 0.0
    %94 = vmatpush1.msra.mxu0 0.0
    %95 = vmatprep.subr.mxu0 0.0
    %96 = vmatpush1.msra.mxu0 0.0
    %97 = vmatprep.subr.mxu0 0.0
    %98 = vmatpush1.msra.mxu0 0.0
    %99 = vmatprep.subr.mxu0 0.0
    %100 = vmatpush1.msra.mxu0 0.0
    %101 = vmatprep.subr.mxu0 0.0
    %102 = vmatpush1.msra.mxu0 0.0
    %103 = vmatprep.subr.mxu0 0.0
    %104 = vmatpush1.msra.mxu0 0.0
    %105 = vmatprep.subr.mxu0 0.0
    %106 = vmatpush1.msra.mxu0 0.0
    %107 = vmatprep.subr.mxu0 0.0
    %108 = vmatpush1.msra.mxu0 0.0
    %109 = vmatprep.subr.mxu0 0.0
    %110 = vmatpush1.msra.mxu0 0.0
    %111 = vmatprep.subr.mxu0 0.0
    %112 = vmatpush1.msra.mxu0 0.0
    %113 = vmatprep.subr.mxu0 0.0
    %114 = vmatpush1.msra.mxu0 0.0
    %115 = vmatprep.mubr.f32.mxu0 0.0
    %116 = vmatmul.mubr.f32.gmra.mrb[0].mxu0 %v27
    %v117 = vpop.f32.mrb[0].mxu0
    %v118 = vadd.f32 %v49, %v117
    %v119 = vpop.f32.mrb[0].mxu0
    %120 = vdwg.mxu0
    %v121 = vmax.f32 %v118, 0.0
    %v122 = vld [vmem:[%s3] sm:$0xff]
    %v123 = vld [vmem:[%s3 + $0x8] sm:$0xff]
    %v124 = vld [vmem:[%s3 + $0x10] sm:$0xff]
    %v125 = vld [vmem:[%s3 + $0x18] sm:$0xff]
    %v126 = vld [vmem:[%s3 + $0x20] sm:$0xff]
    %v127 = vld [vmem:[%s3 + $0x28] sm:$0xff]
    %v128 = vld [vmem:[%s3 + $0x30] sm:$0xff]
    %v129 = vld [vmem:[%s3 + $0x38] sm:$0xff]
    %v130 = vld [vmem:[%s3 + $0x40] sm:$0xff]
    %v131 = vld [vmem:[%s3 + $0x48] sm:$0xff]
    %v132 = vld [vmem:[%s3 + $0x50] sm:$0xff]
    %v133 = vld [vmem:[%s3 + $0x58] sm:$0xff]
    %v134 = vld [vmem:[%s3 + $0x60] sm:$0xff]
    %v135 = vld [vmem:[%s3 + $0x68] sm:$0xff]
    %v136 = vld [vmem:[%s3 + $0x70] sm:$0xff]
    %v137 = vld [vmem:[%s3 + $0x78] sm:$0xff]
    %v138 = vld [vmem:[%s4] sm:$0x1]
    %v140 = vlaneseq
    %v141 = vshrl.u32 %v140, 7
    %v142 = vsub.s32 0, %v141
    %v143 = vrot.slane %v138, %v142
    %145 = vmatprep.subr.mxu0 0.0
    %146 = vmatpush1.msra.mxu0 %v122
    %147 = vmatprep.subr.mxu0 0.0
    %148 = vmatpush1.msra.mxu0 %v123
    %149 = vmatprep.subr.mxu0 0.0
    %150 = vmatpush1.msra.mxu0 %v124
    %151 = vmatprep.subr.mxu0 0.0
    %152 = vmatpush1.msra.mxu0 %v125
    %153 = vmatprep.subr.mxu0 0.0
    %154 = vmatpush1.msra.mxu0 %v126
    %155 = vmatprep.subr.mxu0 0.0
    %156 = vmatpush1.msra.mxu0 %v127
    %157 = vmatprep.subr.mxu0 0.0
    %158 = vmatpush1.msra.mxu0 %v128
    %159 = vmatprep.subr.mxu0 0.0
    %160 = vmatpush1.msra.mxu0 %v129
    %161 = vmatprep.subr.mxu0 0.0
    %162 = vmatpush1.msra.mxu0 %v130
    %163 = vmatprep.subr.mxu0 0.0
    %164 = vmatpush1.msra.mxu0 %v131
    %165 = vmatprep.subr.mxu0 0.0
    %166 = vmatpush1.msra.mxu0 %v132
    %167 = vmatprep.subr.mxu0 0.0
    %168 = vmatpush1.msra.mxu0 %v133
    %169 = vmatprep.subr.mxu0 0.0
    %170 = vmatpush1.msra.mxu0 %v134
    %171 = vmatprep.subr.mxu0 0.0
    %172 = vmatpush1.msra.mxu0 %v135
    %173 = vmatprep.subr.mxu0 0.0
    %174 = vmatpush1.msra.mxu0 %v136
    %175 = vmatprep.subr.mxu0 0.0
    %176 = vmatpush1.msra.mxu0 %v137
    %177 = vmatprep.subr.mxu0 0.0
    %178 = vmatpush1.msra.mxu0 0.0
    %179 = vmatprep.subr.mxu0 0.0
    %180 = vmatpush1.msra.mxu0 0.0
    %181 = vmatprep.subr.mxu0 0.0
    %182 = vmatpush1.msra.mxu0 0.0
    %183 = vmatprep.subr.mxu0 0.0
    %184 = vmatpush1.msra.mxu0 0.0
    %185 = vmatprep.subr.mxu0 0.0
    %186 = vmatpush1.msra.mxu0 0.0
    %187 = vmatprep.subr.mxu0 0.0
    %188 = vmatpush1.msra.mxu0 0.0
    %189 = vmatprep.subr.mxu0 0.0
    %190 = vmatpush1.msra.mxu0 0.0
    %191 = vmatprep.subr.mxu0 0.0
    %192 = vmatpush1.msra.mxu0 0.0
    %193 = vmatprep.subr.mxu0 0.0
    %194 = vmatpush1.msra.mxu0 0.0
    %195 = vmatprep.subr.mxu0 0.0
    %196 = vmatpush1.msra.mxu0 0.0
    %197 = vmatprep.subr.mxu0 0.0
    %198 = vmatpush1.msra.mxu0 0.0
    %199 = vmatprep.subr.mxu0 0.0
    %200 = vmatpush1.msra.mxu0 0.0
    %201 = vmatprep.subr.mxu0 0.0
    %202 = vmatpush1.msra.mxu0 0.0
    %203 = vmatprep.subr.mxu0 0.0
    %204 = vmatpush1.msra.mxu0 0.0
    %205 = vmatprep.subr.mxu0 0.0
    %206 = vmatpush1.msra.mxu0 0.0
    %207 = vmatprep.subr.mxu0 0.0
    %208 = vmatpush1.msra.mxu0 0.0
    %209 = vmatprep.mubr.f32.mxu0 0.0
    %210 = vmatmul.mubr.f32.gmra.mrb[0].mxu0 %v121
    %v211 = vpop.f32.mrb[0].mxu0
    %v212 = vadd.f32 %v143, %v211
    %v213 = vpop.f32.mrb[0].mxu0
    %214 = vdwg.mxu0
    %v215 = vmax.f32 %v212, 0.0
    %v216 = vld [vmem:[%s5] sm:$0xff]
    %v217 = vld [vmem:[%s5 + $0x8] sm:$0xff]
    %v218 = vld [vmem:[%s5 + $0x10] sm:$0xff]
    %v219 = vld [vmem:[%s5 + $0x18] sm:$0xff]
    %v220 = vld [vmem:[%s5 + $0x20] sm:$0xff]
    %v221 = vld [vmem:[%s5 + $0x28] sm:$0xff]
    %v222 = vld [vmem:[%s5 + $0x30] sm:$0xff]
    %v223 = vld [vmem:[%s5 + $0x38] sm:$0xff]
    %v224 = vld [vmem:[%s5 + $0x40] sm:$0xff]
    %v225 = vld [vmem:[%s5 + $0x48] sm:$0xff]
    %v226 = vld [vmem:[%s5 + $0x50] sm:$0xff]
    %v227 = vld [vmem:[%s5 + $0x58] sm:$0xff]
    %v228 = vld [vmem:[%s5 + $0x60] sm:$0xff]
    %v229 = vld [vmem:[%s5 + $0x68] sm:$0xff]
    %v230 = vld [vmem:[%s5 + $0x70] sm:$0xff]
    %v231 = vld [vmem:[%s5 + $0x78] sm:$0xff]
    %v232 = vld [vmem:[%s6] sm:$0x1]
    %v234 = vlaneseq
    %v235 = vshrl.u32 %v234, 7
    %v236 = vsub.s32 0, %v235
    %v237 = vrot.slane %v232, %v236
    %239 = vmatprep.subr.mxu0 0.0
    %240 = vmatpush1.msra.mxu0 %v216
    %241 = vmatprep.subr.mxu0 0.0
    %242 = vmatpush1.msra.mxu0 %v217
    %243 = vmatprep.subr.mxu0 0.0
    %244 = vmatpush1.msra.mxu0 %v218
    %245 = vmatprep.subr.mxu0 0.0
    %246 = vmatpush1.msra.mxu0 %v219
    %247 = vmatprep.subr.mxu0 0.0
    %248 = vmatpush1.msra.mxu0 %v220
    %249 = vmatprep.subr.mxu0 0.0
    %250 = vmatpush1.msra.mxu0 %v221
    %251 = vmatprep.subr.mxu0 0.0
    %252 = vmatpush1.msra.mxu0 %v222
    %253 = vmatprep.subr.mxu0 0.0
    %254 = vmatpush1.msra.mxu0 %v223
    %255 = vmatprep.subr.mxu0 0.0
    %256 = vmatpush1.msra.mxu0 %v224
    %257 = vmatprep.subr.mxu0 0.0
    %258 = vmatpush1.msra.mxu0 %v225
    %259 = vmatprep.subr.mxu0 0.0
    %260 = vmatpush1.msra.mxu0 %v226
    %261 = vmatprep.subr.mxu0 0.0
    %262 = vmatpush1.msra.mxu0 %v227
    %263 = vmatprep.subr.mxu0 0.0
    %264 = vmatpush1.msra.mxu0 %v228
    %265 = vmatprep.subr.mxu0 0.0
    %266 = vmatpush1.msra.mxu0 %v229
    %267 = vmatprep.subr.mxu0 0.0
    %268 = vmatpush1.msra.mxu0 %v230
    %269 = vmatprep.subr.mxu0 0.0
    %270 = vmatpush1.msra.mxu0 %v231
    %271 = vmatprep.subr.mxu0 0.0
    %272 = vmatpush1.msra.mxu0 0.0
    %273 = vmatprep.subr.mxu0 0.0
    %274 = vmatpush1.msra.mxu0 0.0
    %275 = vmatprep.subr.mxu0 0.0
    %276 = vmatpush1.msra.mxu0 0.0
    %277 = vmatprep.subr.mxu0 0.0
    %278 = vmatpush1.msra.mxu0 0.0
    %279 = vmatprep.subr.mxu0 0.0
    %280 = vmatpush1.msra.mxu0 0.0
    %281 = vmatprep.subr.mxu0 0.0
    %282 = vmatpush1.msra.mxu0 0.0
    %283 = vmatprep.subr.mxu0 0.0
    %284 = vmatpush1.msra.mxu0 0.0
    %285 = vmatprep.subr.mxu0 0.0
    %286 = vmatpush1.msra.mxu0 0.0
    %287 = vmatprep.subr.mxu0 0.0
    %288 = vmatpush1.msra.mxu0 0.0
    %289 = vmatprep.subr.mxu0 0.0
    %290 = vmatpush1.msra.mxu0 0.0
    %291 = vmatprep.subr.mxu0 0.0
    %292 = vmatpush1.msra.mxu0 0.0
    %293 = vmatprep.subr.mxu0 0.0
    %294 = vmatpush1.msra.mxu0 0.0
    %295 = vmatprep.subr.mxu0 0.0
    %296 = vmatpush1.msra.mxu0 0.0
    %297 = vmatprep.subr.mxu0 0.0
    %298 = vmatpush1.msra.mxu0 0.0
    %299 = vmatprep.subr.mxu0 0.0
    %300 = vmatpush1.msra.mxu0 0.0
    %301 = vmatprep.subr.mxu0 0.0
    %302 = vmatpush1.msra.mxu0 0.0
    %303 = vmatprep.mubr.f32.mxu0 0.0
    %304 = vmatmul.mubr.f32.gmra.mrb[0].mxu0 %v215
    %v305 = vpop.f32.mrb[0].mxu0
    %v306 = vadd.f32 %v237, %v305
    %v307 = vpop.f32.mrb[0].mxu0
    %308 = vdwg.mxu0
    %v309 = vmax.f32 %v306, 0.0
    %310 = vst [vmem:[#allocation2] sm:$0xff] %v309
    // Predicated region
    $region30: #{mlp_forward.1} parent=1 // pred_check
      _
    $region31: #{mlp_forward.1} parent=1 // pred_check_branch
      %312 = sbr.rel (0) target = $region33
    $region32: #{mlp_forward.1} parent=1 // pred_region
      %s314 = ssub.s32 128, 128
      %315 = vsyncadd [#allocation3], %s314
      %s317 = sshll.u32 [#allocation2], 4
      %s318 = int_to_ptr.vmem [resolvable:$true] %s317
      %320 = dma.vmem_to_hbm [thread:$0]  %s318, 128, %s7, [#allocation3]
    $region33: #{mlp_forward.1} parent=1 // pred_fallthru
      _
    // Predicated region
    $region34: #{mlp_forward.1} parent=1 // pred_check
      _
    $region35: #{mlp_forward.1} parent=1 // pred_check_branch
      %322 = sbr.rel (0) target = $region37
    $region36: #{mlp_forward.1} parent=1 // pred_region
      %323 = dma.done [#allocation3], 128
    $region37: #{mlp_forward.1} parent=1 // pred_fallthru
      _
    %324 = vsyncpa [#allocation3], 1

</llo_original>
